<compile_context>
chip_gen: v6e
topology: v6e:2x2x1
jax: 0.10.0
libtpu: 0.0.40
codegen_flags: <defaults>
</compile_context>

<pallas_src>
import math

import jax
import jax.numpy as jnp
from jax.experimental import pallas as pl
from jax.experimental.pallas import tpu as pltpu

_LOG2 = math.log(2.0)  # Python float -> folded as a literal, no captured const.

_LANE_CANDIDATES = (4096, 2048, 1024, 512, 256, 128)
_PAD_LANE_WIDTH = 512  # only used for truly ragged sizes (not a multiple of 128)


def _shifted_softplus_kernel(x_ref, o_ref):
    x = x_ref[...].astype(jnp.float32)
    # Numerically stable softplus: max(x, 0) + log1p(exp(-|x|)).
    # TODO(synk): on v7x (~3.2 TB/s HBM) the 2 transcendentals/element (exp,
    # log1p) can make the single EUP the binding slot; if a bundle dump shows
    # EUP saturation, replace log1p(t), t in (0,1], with a short VALU minimax
    # polynomial.  Safely HBM-bound on v5e/v6e as-is.
    sp = jnp.maximum(x, 0.0) + jnp.log1p(jnp.exp(-jnp.abs(x)))
    o_ref[...] = (sp - _LOG2).astype(o_ref.dtype)


def _choose_layout(n, target_block_rows):
    """Pick (lane_width, n_pad, rows, block_rows, grid_steps) for n elements."""
    lane_width = None
    for lw in _LANE_CANDIDATES:
        if n % lw == 0:
            lane_width = lw
            break
    if lane_width is None:
        # Ragged size: pad to a lane-dense slab (rare path).
        lane_width = _PAD_LANE_WIDTH
        n_pad = pl.cdiv(n, lane_width) * lane_width
    else:
        n_pad = n
    rows = n_pad // lane_width

    br = min(target_block_rows, rows)
    if rows >= 16:
        # Guarantee >= 2 grid steps so the "parallel" axis can shard across
        # v7x's two TensorCores, while keeping blocks a multiple of 8 rows.
        half = ((pl.cdiv(rows, 2) + 7) // 8) * 8
        br = min(br, half)
        br = max(8, br - br % 8)
    grid_steps = pl.cdiv(rows, br)
    return lane_width, n_pad, rows, br, grid_steps


def shifted_softplus(x, *, block_rows=256, donate_input=False):
    """Applies ShiftedSoftplus elementwise to an array of any shape.

    block_rows=256 with a 4096 lane width gives 4 MiB f32 blocks (~16 MiB
    resident double-buffered) — fits v7x's 64 MiB VMEM and v5e/v6e's 128 MiB.
    Set donate_input=True (and donate x at the jit boundary) to alias the
    output onto the input buffer for the common in-place activation case.
    """
    orig_shape = x.shape
    orig_dtype = x.dtype
    n = x.size
    if n == 0:
        return x

    lane_width, n_pad, rows, br, grid_steps = _choose_layout(n, block_rows)

    flat = x.reshape(-1)              # free (row-major) reshape
    padded = n_pad != n
    if padded:
        flat = jnp.pad(flat, (0, n_pad - n))
    x2d = flat.reshape(rows, lane_width)

    itemsize = jnp.dtype(orig_dtype).itemsize
    cost = pl.CostEstimate(
        flops=5 * n_pad,
        transcendentals=2 * n_pad,
        bytes_accessed=2 * n_pad * itemsize,
    )

    out2d = pl.pallas_call(
        _shifted_softplus_kernel,
        out_shape=jax.ShapeDtypeStruct((rows, lane_width), orig_dtype),
        grid=(grid_steps,),
        in_specs=[pl.BlockSpec((br, lane_width), lambda i: (i, 0))],
        out_specs=pl.BlockSpec((br, lane_width), lambda i: (i, 0)),
        compiler_params=pltpu.CompilerParams(
            dimension_semantics=("parallel",),
            vmem_limit_bytes=48 * 1024 * 1024,
        ),
        cost_estimate=cost,
        input_output_aliases={0: 0} if donate_input else {},
    )(x2d)

    if padded:
        return out2d.reshape(-1)[:n].reshape(orig_shape)
    return out2d.reshape(orig_shape)  # free reshape, no extra HBM pass


if __name__ == "__main__":
    key = jax.random.PRNGKey(0)

    # SchNet applies ShiftedSoftplus to [num_nodes, hidden_channels] activations.
    N, H = 64, 128
    x = jax.random.normal(key, (N, H), dtype=jnp.float32) * 3.0
    out = jax.block_until_ready(shifted_softplus(x))
    ref = jax.nn.softplus(x) - _LOG2
    assert out.shape == x.shape and out.dtype == x.dtype
    assert jnp.allclose(out, ref, atol=1e-6, rtol=1e-6), "mismatch vs reference"

    # Multi-block / multi-grid-step path (rows >= 16 -> >= 2 grid steps).
    x1 = jax.random.normal(jax.random.PRNGKey(2), (512, 256), dtype=jnp.float32)
    out1 = jax.block_until_ready(shifted_softplus(x1))
    ref1 = jax.nn.softplus(x1) - _LOG2
    assert jnp.allclose(out1, ref1, atol=1e-6, rtol=1e-6), "mismatch (multi-block)"

    # Ragged path (size not a multiple of 128 -> pad + slice fallback).
    x2 = jax.random.normal(jax.random.PRNGKey(1), (10, 7), dtype=jnp.float32)
    out2 = jax.block_until_ready(shifted_softplus(x2))
    ref2 = jax.nn.softplus(x2) - _LOG2
    assert out2.shape == x2.shape
    assert jnp.allclose(out2, ref2, atol=1e-6, rtol=1e-6), "mismatch (ragged path)"

    # bf16 I/O path (f32 compute inside the kernel, result rounded to bf16).
    x3 = (jax.random.normal(jax.random.PRNGKey(3), (16, 256), dtype=jnp.float32)
          * 2.0).astype(jnp.bfloat16)
    out3 = jax.block_until_ready(shifted_softplus(x3))
    ref3 = (jax.nn.softplus(x3.astype(jnp.float32)) - _LOG2)
    assert out3.dtype == jnp.bfloat16
    assert jnp.allclose(out3.astype(jnp.float32), ref3, atol=2e-2, rtol=2e-2), \
        "mismatch (bf16 path)"

    print("KERNEL_OK")
</pallas_src>

<mosaic_0001>
module attributes {stable_mosaic.version = 11 : i64} {
  func.func @_shifted_softplus_kernel(%arg0: i32, %arg1: memref<2x4096xf32, #tpu.memory_space<vmem>>, %arg2: memref<2x4096xf32, #tpu.memory_space<vmem>>) attributes {dimension_semantics = [#tpu.dimension_semantics<parallel>], iteration_bounds = array<i64: 1>, scalar_prefetch = 0 : i64, scratch_operands = 0 : i64, tpu.core_type = #tpu.core_type<tc>, window_params = [{transform_indices = @transform_0, window_bounds = array<i64: 2, 4096>}, {transform_indices = @transform_1, window_bounds = array<i64: 2, 4096>}]} {
    %c0 = arith.constant 0 : index
    %c0_0 = arith.constant 0 : index
    %0 = vector.load %arg1[%c0, %c0_0] : memref<2x4096xf32, #tpu.memory_space<vmem>>, vector<2x4096xf32>
    %cst = arith.constant 0.000000e+00 : f32
    %1 = vector.broadcast %cst : f32 to vector<2x4096xf32>
    %2 = arith.maximumf %0, %1 : vector<2x4096xf32>
    %3 = math.absf %0 : vector<2x4096xf32>
    %cst_1 = arith.constant 0.000000e+00 : f32
    %4 = vector.broadcast %cst_1 : f32 to vector<2x4096xf32>
    %5 = arith.subf %4, %3 : vector<2x4096xf32>
    %6 = math.exp %5 : vector<2x4096xf32>
    %7 = math.log1p %6 : vector<2x4096xf32>
    %8 = arith.addf %2, %7 : vector<2x4096xf32>
    %cst_2 = arith.constant 0.693147182 : f32
    %9 = vector.broadcast %cst_2 : f32 to vector<2x4096xf32>
    %10 = arith.subf %8, %9 : vector<2x4096xf32>
    %c0_3 = arith.constant 0 : index
    %c0_4 = arith.constant 0 : index
    %11 = vector.load %arg2[%c0_3, %c0_4] : memref<2x4096xf32, #tpu.memory_space<vmem>>, vector<2x4096xf32>
    tpu.vector_store %arg2[%c0_3, %c0_4], %10 {strides = array<i32>} : memref<2x4096xf32, #tpu.memory_space<vmem>>, vector<2x4096xf32>,
    return
  }
  func.func @transform_0(%arg0: i32) -> (i32, i32) {
    %c0_i32 = arith.constant 0 : i32
    %c0_i32_0 = arith.constant 0 : i32
    return %arg0, %c0_i32 : i32, i32
  }
  func.func @transform_1(%arg0: i32) -> (i32, i32) {
    %c0_i32 = arith.constant 0 : i32
    %c0_i32_0 = arith.constant 0 : i32
    return %arg0, %c0_i32 : i32, i32
  }
}

</mosaic_0001>

<llo_original>
// kernel: tpu_custom_call.1
$region0: #{tpu_custom_call.1}
  #allocation0 [shape = 'u32[]', space=smem, size = 0x4, offset = 0x4, fixed_abs, tag = 'smem constant byte address 0x4 - core index']
  #allocation1 [shape = 'u32[144,128]{1,0:T(1,128)}', space=vmem, size = 0x12000, scoped, tag = 'internal scratch']
  %s0 = inlined_call_operand.hbm [shape: f32[2,4096], index: 0, kind: input, shape index: {}]
  %s1 = inlined_call_operand.hbm [shape: f32[2,4096], index: 1, kind: output, shape index: {}]
  %s2 = sld [smem:[#allocation0]]
  $region18: #{tpu_custom_call.1} parent=0
    _
  %s4 = ssub.s32 1, %s2
  %s5 = scalar_select 0, %s4, %s2
  $region1: #{tpu_custom_call.1} parent=0
    #allocation2 [shape = 'u8[32768]{0}', space=vmem, size = 0x8000, scoped, tag = 'input window, operand 0, single buffered']
    #allocation3 [shape = 's32[1]{0}', space=sflag, size = 0x4, scoped, tag = 'scoped memory for tpu_custom_call.1']
    #allocation4 [shape = 's32[1]{0}', space=sflag, size = 0x4, scoped, tag = 'scoped memory for tpu_custom_call.1']
    #allocation5 [shape = 'u8[32768]{0}', space=vmem, size = 0x8000, scoped, tag = 'output window, operand 0, single buffered']
    %6 = vsyncpa [#allocation3], 0
    %7 = vsyncpa [#allocation4], 0
    // Predicated region
    $region2: #{tpu_custom_call.1} parent=1 // pred_check
      _
    $region3: #{tpu_custom_call.1} parent=1 // pred_check_branch
      %9 = sbr.rel (0) target = $region5
    $region4: #{tpu_custom_call.1} parent=1 // pred_region
      %s11 = ssub.s32 1024, 1024
      %12 = vsyncadd [#allocation3], %s11
      %s14 = sshll.u32 [#allocation2], 4
      %s15 = int_to_ptr.vmem [resolvable:$true] %s14
      %17 = dma.hbm_to_vmem [thread:$0]  %s0, 1024, %s15, [#allocation3]
    $region5: #{tpu_custom_call.1} parent=1 // pred_fallthru
      _
    // Predicated region
    $region6: #{tpu_custom_call.1} parent=1 // pred_check
      _
    $region7: #{tpu_custom_call.1} parent=1 // pred_check_branch
      %19 = sbr.rel (0) target = $region9
    $region8: #{tpu_custom_call.1} parent=1 // pred_region
      %20 = dma.done [#allocation3], 1024
    $region9: #{tpu_custom_call.1} parent=1 // pred_fallthru
      _
    %v21 = vld [vmem:[#allocation2] sm:$0xff]
    %v22 = vld [vmem:[#allocation2 + $0x8] sm:$0xff]
    %v23 = vld [vmem:[#allocation2 + $0x10] sm:$0xff]
    %v24 = vld [vmem:[#allocation2 + $0x18] sm:$0xff]
    %v25 = vld [vmem:[#allocation2 + $0x20] sm:$0xff]
    %v26 = vld [vmem:[#allocation2 + $0x28] sm:$0xff]
    %v27 = vld [vmem:[#allocation2 + $0x30] sm:$0xff]
    %v28 = vld [vmem:[#allocation2 + $0x38] sm:$0xff]
    %v29 = vmax.f32 %v21, 0.0
    %v30 = vmax.f32 %v22, 0.0
    %v31 = vmax.f32 %v23, 0.0
    %v32 = vmax.f32 %v24, 0.0
    %v33 = vmax.f32 %v25, 0.0
    %v34 = vmax.f32 %v26, 0.0
    %v35 = vmax.f32 %v27, 0.0
    %v36 = vmax.f32 %v28, 0.0
    %v37 = vand.u32 2147483647, %v21
    %v38 = vand.u32 2147483647, %v22
    %v39 = vand.u32 2147483647, %v23
    %v40 = vand.u32 2147483647, %v24
    %v41 = vand.u32 2147483647, %v25
    %v42 = vand.u32 2147483647, %v26
    %v43 = vand.u32 2147483647, %v27
    %v44 = vand.u32 2147483647, %v28
    %v45 = vsub.f32 0.0, %v37
    %v46 = vsub.f32 0.0, %v38
    %v47 = vsub.f32 0.0, %v39
    %v48 = vsub.f32 0.0, %v40
    %v49 = vsub.f32 0.0, %v41
    %v50 = vsub.f32 0.0, %v42
    %v51 = vsub.f32 0.0, %v43
    %v52 = vsub.f32 0.0, %v44
    %v53 = vmul.f32 %v45, 1.442695
    %v54 = vpow.pop %v53
    %v55 = vmul.f32 %v46, 1.442695
    %v56 = vpow.pop %v55
    %v57 = vmul.f32 %v47, 1.442695
    %v58 = vpow.pop %v57
    %v59 = vmul.f32 %v48, 1.442695
    %v60 = vpow.pop %v59
    %v61 = vmul.f32 %v49, 1.442695
    %v62 = vpow.pop %v61
    %v63 = vmul.f32 %v50, 1.442695
    %v64 = vpow.pop %v63
    %v65 = vmul.f32 %v51, 1.442695
    %v66 = vpow.pop %v65
    %v67 = vmul.f32 %v52, 1.442695
    %v68 = vpow.pop %v67
    %v69 = vadd.f32 %v54, 1.0
    %v70 = vlog2.pop %v69
    %v71 = vmul.f32 %v70, 0.6931472
    %v72 = vmul.f32 -0.5, %v54
    %v73 = vadd.f32 %v72, 1.0
    %v74 = vmul.f32 %v73, %v54
    %v75 = vand.u32 2147483647, %v54
    %vm76 = vcmp.lt.f32.partialorder %v75, 0.0004427343
    %v77 = vsel %vm76, %v74, %v71
    %v78 = vadd.f32 %v56, 1.0
    %v79 = vlog2.pop %v78
    %v80 = vmul.f32 %v79, 0.6931472
    %v81 = vmul.f32 -0.5, %v56
    %v82 = vadd.f32 %v81, 1.0
    %v83 = vmul.f32 %v82, %v56
    %v84 = vand.u32 2147483647, %v56
    %vm85 = vcmp.lt.f32.partialorder %v84, 0.0004427343
    %v86 = vsel %vm85, %v83, %v80
    %v87 = vadd.f32 %v58, 1.0
    %v88 = vlog2.pop %v87
    %v89 = vmul.f32 %v88, 0.6931472
    %v90 = vmul.f32 -0.5, %v58
    %v91 = vadd.f32 %v90, 1.0
    %v92 = vmul.f32 %v91, %v58
    %v93 = vand.u32 2147483647, %v58
    %vm94 = vcmp.lt.f32.partialorder %v93, 0.0004427343
    %v95 = vsel %vm94, %v92, %v89
    %v96 = vadd.f32 %v60, 1.0
    %v97 = vlog2.pop %v96
    %v98 = vmul.f32 %v97, 0.6931472
    %v99 = vmul.f32 -0.5, %v60
    %v100 = vadd.f32 %v99, 1.0
    %v101 = vmul.f32 %v100, %v60
    %v102 = vand.u32 2147483647, %v60
    %vm103 = vcmp.lt.f32.partialorder %v102, 0.0004427343
    %v104 = vsel %vm103, %v101, %v98
    %v105 = vadd.f32 %v62, 1.0
    %v106 = vlog2.pop %v105
    %v107 = vmul.f32 %v106, 0.6931472
    %v108 = vmul.f32 -0.5, %v62
    %v109 = vadd.f32 %v108, 1.0
    %v110 = vmul.f32 %v109, %v62
    %v111 = vand.u32 2147483647, %v62
    %vm112 = vcmp.lt.f32.partialorder %v111, 0.0004427343
    %v113 = vsel %vm112, %v110, %v107
    %v114 = vadd.f32 %v64, 1.0
    %v115 = vlog2.pop %v114
    %v116 = vmul.f32 %v115, 0.6931472
    %v117 = vmul.f32 -0.5, %v64
    %v118 = vadd.f32 %v117, 1.0
    %v119 = vmul.f32 %v118, %v64
    %v120 = vand.u32 2147483647, %v64
    %vm121 = vcmp.lt.f32.partialorder %v120, 0.0004427343
    %v122 = vsel %vm121, %v119, %v116
    %v123 = vadd.f32 %v66, 1.0
    %v124 = vlog2.pop %v123
    %v125 = vmul.f32 %v124, 0.6931472
    %v126 = vmul.f32 -0.5, %v66
    %v127 = vadd.f32 %v126, 1.0
    %v128 = vmul.f32 %v127, %v66
    %v129 = vand.u32 2147483647, %v66
    %vm130 = vcmp.lt.f32.partialorder %v129, 0.0004427343
    %v131 = vsel %vm130, %v128, %v125
    %v132 = vadd.f32 %v68, 1.0
    %v133 = vlog2.pop %v132
    %v134 = vmul.f32 %v133, 0.6931472
    %v135 = vmul.f32 -0.5, %v68
    %v136 = vadd.f32 %v135, 1.0
    %v137 = vmul.f32 %v136, %v68
    %v138 = vand.u32 2147483647, %v68
    %vm139 = vcmp.lt.f32.partialorder %v138, 0.0004427343
    %v140 = vsel %vm139, %v137, %v134
    %v141 = vadd.f32 %v29, %v77
    %v142 = vadd.f32 %v30, %v86
    %v143 = vadd.f32 %v31, %v95
    %v144 = vadd.f32 %v32, %v104
    %v145 = vadd.f32 %v33, %v113
    %v146 = vadd.f32 %v34, %v122
    %v147 = vadd.f32 %v35, %v131
    %v148 = vadd.f32 %v36, %v140
    %v149 = vsub.f32 %v141, 0.6931472
    %v150 = vsub.f32 %v142, 0.6931472
    %v151 = vsub.f32 %v143, 0.6931472
    %v152 = vsub.f32 %v144, 0.6931472
    %v153 = vsub.f32 %v145, 0.6931472
    %v154 = vsub.f32 %v146, 0.6931472
    %v155 = vsub.f32 %v147, 0.6931472
    %v156 = vsub.f32 %v148, 0.6931472
    %157 = vst [vmem:[#allocation5] sm:$0xff] %v149
    %158 = vst [vmem:[#allocation5 + $0x8] sm:$0xff] %v150
    %159 = vst [vmem:[#allocation5 + $0x10] sm:$0xff] %v151
    %160 = vst [vmem:[#allocation5 + $0x18] sm:$0xff] %v152
    %161 = vst [vmem:[#allocation5 + $0x20] sm:$0xff] %v153
    %162 = vst [vmem:[#allocation5 + $0x28] sm:$0xff] %v154
    %163 = vst [vmem:[#allocation5 + $0x30] sm:$0xff] %v155
    %164 = vst [vmem:[#allocation5 + $0x38] sm:$0xff] %v156
    // Predicated region
    $region10: #{tpu_custom_call.1} parent=1 // pred_check
      _
    $region11: #{tpu_custom_call.1} parent=1 // pred_check_branch
      %166 = sbr.rel (0) target = $region13
    $region12: #{tpu_custom_call.1} parent=1 // pred_region
      %s168 = ssub.s32 1024, 1024
      %169 = vsyncadd [#allocation4], %s168
      %s171 = sshll.u32 [#allocation5], 4
      %s172 = int_to_ptr.vmem [resolvable:$true] %s171
      %174 = dma.vmem_to_hbm [thread:$0]  %s172, 1024, %s1, [#allocation4]
    $region13: #{tpu_custom_call.1} parent=1 // pred_fallthru
      _
    // Predicated region
    $region14: #{tpu_custom_call.1} parent=1 // pred_check
      _
    $region15: #{tpu_custom_call.1} parent=1 // pred_check_branch
      %176 = sbr.rel (0) target = $region17
    $region16: #{tpu_custom_call.1} parent=1 // pred_region
      %177 = dma.done [#allocation4], 1024
    $region17: #{tpu_custom_call.1} parent=1 // pred_fallthru
      _
    %178 = vsyncpa [#allocation3], 1
    %179 = vsyncpa [#allocation4], 1

</llo_original>
